<compile_context>
chip_gen: v6e
topology: v6e:2x2x1
jax: 0.10.0
libtpu: 0.0.40
codegen_flags: <defaults>
</compile_context>

<pallas_src>
import functools

import jax
import jax.numpy as jnp
from jax import lax
from jax.experimental import pallas as pl
from jax.experimental.pallas import tpu as pltpu

_LANES = 128
_SUBLANES = 8
_TARGET_TILE_ROWS = 2048          # 1 MiB per f32 input block (review: 2048-4096)

_CORE_PARALLEL = getattr(pltpu, "CORE_PARALLEL", pltpu.PARALLEL)


def _round_up(x, m):
    return (x + m - 1) // m * m


@functools.lru_cache(maxsize=1)
def _num_tensorcores():
    """Conservative TensorCore count: 2 only on v7x, else 1."""
    try:
        kind = jax.devices()[0].device_kind.lower()
    except Exception:  # pragma: no cover - defensive
        return 1
    return 2 if "v7" in kind else 1


def _row_multiple(*dtypes):
    """Sublane multiple required for the block's second-to-last dim."""
    m = _SUBLANES
    for d in dtypes:
        item = jnp.dtype(d).itemsize
        m = max(m, _SUBLANES * max(1, 4 // item))   # 8 (32-bit), 16 (16-bit), 32 (8-bit)
    return m


def _make_kernel(rows_valid, tile_rows, steps, needs_mask, binary_targets):
    """Build the partial-sum kernel.

    out_ref block: (1, 3, 8, 128) per core, holding per-lane partial sums of
      [0] sum of  t*log(p) + (1-t)*log(1-p)   (i.e. -BCE term)
      [1] sum of  p*t
      [2] sum of  p + t
    accumulated directly in the VMEM-resident output tile across the
    "arbitrary" grid axis (P3 pattern, no scratch).
    """

    def fold(x):
        # (tile_rows, 128) -> (8, 128): sublane-aligned regroup + VPU adds only.
        return x.reshape(tile_rows // _SUBLANES, _SUBLANES, _LANES).sum(axis=0)

    def kernel(p_ref, t_ref, out_ref):
        core = pl.program_id(0)
        step = pl.program_id(1)

        @pl.when(step == 0)
        def _():
            out_ref[...] = jnp.zeros_like(out_ref)

        # Native-dtype stream, upcast after load (bf16-safe near p~0 / p~1).
        p = p_ref[...].astype(jnp.float32)
        t = t_ref[...].astype(jnp.float32)

        def accumulate(p, t):
            if binary_targets:
                # Single log per element (valid only for strictly 0/1 targets).
                q = jnp.where(t != 0.0, p, 1.0 - p)
                neg_bce = jnp.maximum(jnp.log(q), -100.0)
            else:
                # PyTorch BCELoss clamps each log at -100; clamp BEFORE the
                # multiply so zero rows (padding / masked) contribute exactly 0.
                log_p = jnp.maximum(jnp.log(p), -100.0)
                log_1mp = jnp.maximum(jnp.log(1.0 - p), -100.0)
                neg_bce = log_1mp + t * (log_p - log_1mp)
            out_ref[0, 0] += fold(neg_bce)
            out_ref[0, 1] += fold(p * t)
            out_ref[0, 2] += fold(p + t)

        if needs_mask:
            blk = core * steps + step            # logical (unclamped) block index
            ragged = (blk + 1) * tile_rows > rows_valid

            @pl.when(ragged)
            def _():
                row = blk * tile_rows + lax.broadcasted_iota(
                    jnp.int32, (tile_rows, _LANES), 0)
                valid = row < rows_valid
                # Mask BEFORE any math: OOB block contents are undefined.
                accumulate(jnp.where(valid, p, 0.0), jnp.where(valid, t, 0.0))

            @pl.when(jnp.logical_not(ragged))
            def _():
                accumulate(p, t)
        else:
            accumulate(p, t)

    return kernel


@functools.partial(jax.jit, static_argnames=("assume_binary_targets",))
def bce_dice_loss(pred, target, *, assume_binary_targets=False):
    """Equivalent of BCEDiceLoss.forward(pred, target). Returns a scalar f32.

    Set assume_binary_targets=True only when targets are strictly 0/1 (halves
    the per-element log count).
    """
    p = pred.reshape(-1)
    t = target.reshape(-1)
    n = p.size

    num_cores = _num_tensorcores()
    row_mult = _row_multiple(p.dtype, t.dtype)
    chunk = row_mult * _LANES

    # Minimal pad only when the flat size is not a lane/sublane multiple; the
    # padded zeros contribute exactly 0 to every partial sum (clamp-then-mul).
    n_pad = _round_up(n, chunk)
    if n_pad != n:
        p = jnp.pad(p, (0, n_pad - n))
        t = jnp.pad(t, (0, n_pad - n))
    rows = n_pad // _LANES
    p2 = p.reshape(rows, _LANES)
    t2 = t.reshape(rows, _LANES)

    tile_rows = min(_TARGET_TILE_ROWS,
                    _round_up(pl.cdiv(rows, num_cores), row_mult))
    steps = pl.cdiv(rows, num_cores * tile_rows)
    covered_rows = num_cores * steps * tile_rows
    needs_mask = covered_rows != rows          # static (shapes are static)
    last_blk = pl.cdiv(rows, tile_rows) - 1

    if num_cores > 1:
        # Clamp so a fully-out-of-range block (odd block count split across 2
        # cores) never issues an OOB DMA; the in-kernel mask zeroes it out.
        def in_map(c, s):
            return (jnp.minimum(c * steps + s, last_blk), 0)
    else:
        def in_map(c, s):
            return (c * steps + s, 0)

    in_spec = pl.BlockSpec((tile_rows, _LANES), in_map)
    out_spec = pl.BlockSpec((1, 3, _SUBLANES, _LANES), lambda c, s: (c, 0, 0, 0))

    kernel = _make_kernel(rows, tile_rows, steps, needs_mask,
                          assume_binary_targets)

    core_sem = _CORE_PARALLEL if num_cores > 1 else pltpu.ARBITRARY

    partials = pl.pallas_call(
        kernel,
        out_shape=jax.ShapeDtypeStruct((num_cores, 3, _SUBLANES, _LANES),
                                       jnp.float32),
        grid_spec=pltpu.PrefetchScalarGridSpec(
            num_scalar_prefetch=0,
            grid=(num_cores, steps),
            in_specs=[in_spec, in_spec],
            out_specs=out_spec,
        ),
        compiler_params=pltpu.CompilerParams(
            dimension_semantics=(core_sem, pltpu.ARBITRARY)),
    )(p2, t2)

    sums = jnp.sum(partials, axis=(0, 2, 3))            # (3,)
    bce_loss = -sums[0] / jnp.float32(n)                # mean of -(neg_bce)
    dice_coef = (2.0 * sums[1] + 1.0) / (sums[2] + 1.0)
    return bce_loss + (1.0 - dice_coef)


def _reference(pred, target):
    p = pred.reshape(-1).astype(jnp.float32)
    t = target.reshape(-1).astype(jnp.float32)
    log_p = jnp.maximum(jnp.log(p), -100.0)
    log_1mp = jnp.maximum(jnp.log(1.0 - p), -100.0)
    bce = jnp.mean(-(t * log_p + (1.0 - t) * log_1mp))
    dice = (2.0 * jnp.sum(p * t) + 1.0) / (jnp.sum(p) + jnp.sum(t) + 1.0)
    return bce + (1.0 - dice)


def _check(x, y, **kw):
    out = bce_dice_loss(x, y, **kw)
    jax.block_until_ready(out)
    ref = _reference(x, y)
    assert jnp.allclose(out, ref, rtol=1e-4, atol=1e-5), (out, ref, kw)


if __name__ == "__main__":
    key = jax.random.PRNGKey(0)
    k1, k2, k3, k4, k5, k6 = jax.random.split(key, 6)

    # pred must be probabilities in [0, 1] (BCELoss contract); target binary.
    x = jax.nn.sigmoid(jax.random.normal(k1, (2, 4, 16, 16), jnp.float32))
    y = (jax.random.uniform(k2, (2, 4, 16, 16), jnp.float32) > 0.5).astype(
        jnp.float32)
    _check(x, y)                                   # aligned, single block
    _check(x, y, assume_binary_targets=True)       # single-log fast path

    # Misaligned flat size -> exercises the minimal-pad path.
    x2 = jax.nn.sigmoid(jax.random.normal(k3, (3, 5, 23, 17), jnp.float32))
    y2 = (jax.random.uniform(k4, (3, 5, 23, 17), jnp.float32) > 0.5).astype(
        jnp.float32)
    _check(x2, y2)

    # Lane-aligned but not tile-aligned -> exercises the in-kernel ragged-row
    # mask (rows = 2056 > tile_rows = 2048, no wrapper pad).
    x3 = jax.nn.sigmoid(jax.random.normal(k5, (2, 4, 257, 128), jnp.float32))
    y3 = (jax.random.uniform(k6, (2, 4, 257, 128), jnp.float32) > 0.5).astype(
        jnp.float32)
    _check(x3, y3)
    _check(x3, y3, assume_binary_targets=True)

    print("KERNEL_OK")
</pallas_src>

<mosaic_0001>
module attributes {stable_mosaic.version = 11 : i64} {
  func.func @kernel(%arg0: i32, %arg1: i32, %arg2: memref<16x128xf32, #tpu.memory_space<vmem>>, %arg3: memref<16x128xf32, #tpu.memory_space<vmem>>, %arg4: memref<1x3x8x128xf32, #tpu.memory_space<vmem>>) attributes {dimension_semantics = [#tpu.dimension_semantics<arbitrary>, #tpu.dimension_semantics<arbitrary>], iteration_bounds = array<i64: 1, 1>, scalar_prefetch = 0 : i64, scratch_operands = 0 : i64, tpu.core_type = #tpu.core_type<tc>, window_params = [{transform_indices = @transform_0, window_bounds = array<i64: 16, 128>}, {transform_indices = @transform_1, window_bounds = array<i64: 16, 128>}, {transform_indices = @transform_2, window_bounds = array<i64: 1, 3, 8, 128>}]} {
    %c0_i32 = arith.constant 0 : i32
    %0 = arith.cmpi eq, %arg1, %c0_i32 : i32
    %1 = arith.extui %0 : i1 to i32
    %c0_i32_0 = arith.constant 0 : i32
    %2 = arith.cmpi ne, %1, %c0_i32_0 : i32
    scf.if %2 {
      %cst_31 = arith.constant 0.000000e+00 : f32
      %42 = vector.broadcast %cst_31 : f32 to vector<1x3x8x128xf32>
      %c0_32 = arith.constant 0 : index
      %c0_33 = arith.constant 0 : index
      %c0_34 = arith.constant 0 : index
      %c0_35 = arith.constant 0 : index
      %43 = vector.load %arg4[%c0_32, %c0_33, %c0_34, %c0_35] : memref<1x3x8x128xf32, #tpu.memory_space<vmem>>, vector<1x3x8x128xf32>
      tpu.vector_store %arg4[%c0_32, %c0_33, %c0_34, %c0_35], %42 {strides = array<i32>} : memref<1x3x8x128xf32, #tpu.memory_space<vmem>>, vector<1x3x8x128xf32>,
    } else {
    }
    %c0 = arith.constant 0 : index
    %c0_1 = arith.constant 0 : index
    %3 = vector.load %arg2[%c0, %c0_1] : memref<16x128xf32, #tpu.memory_space<vmem>>, vector<16x128xf32>
    %c0_2 = arith.constant 0 : index
    %c0_3 = arith.constant 0 : index
    %4 = vector.load %arg3[%c0_2, %c0_3] : memref<16x128xf32, #tpu.memory_space<vmem>>, vector<16x128xf32>
    %5 = math.log %3 : vector<16x128xf32>
    %cst = arith.constant -1.000000e+02 : f32
    %6 = vector.broadcast %cst : f32 to vector<16x128xf32>
    %7 = arith.maximumf %5, %6 : vector<16x128xf32>
    %cst_4 = arith.constant 1.000000e+00 : f32
    %8 = vector.broadcast %cst_4 : f32 to vector<16x128xf32>
    %9 = arith.subf %8, %3 : vector<16x128xf32>
    %10 = math.log %9 : vector<16x128xf32>
    %cst_5 = arith.constant -1.000000e+02 : f32
    %11 = vector.broadcast %cst_5 : f32 to vector<16x128xf32>
    %12 = arith.maximumf %10, %11 : vector<16x128xf32>
    %13 = arith.subf %7, %12 : vector<16x128xf32>
    %14 = arith.mulf %4, %13 : vector<16x128xf32>
    %15 = arith.addf %12, %14 : vector<16x128xf32>
    %c0_6 = arith.constant 0 : index
    %c0_7 = arith.constant 0 : index
    %c0_8 = arith.constant 0 : index
    %c0_9 = arith.constant 0 : index
    %16 = vector.load %arg4[%c0_6, %c0_7, %c0_8, %c0_9] : memref<1x3x8x128xf32, #tpu.memory_space<vmem>>, vector<1x1x8x128xf32>
    %17 = vector.shape_cast %16 : vector<1x1x8x128xf32> to vector<8x128xf32>
    %18 = vector.shape_cast %15 : vector<16x128xf32> to vector<2x8x128xf32>
    %cst_10 = arith.constant dense<0.000000e+00> : vector<8x128xf32>
    %19 = vector.multi_reduction <add>, %18, %cst_10 [0] : vector<2x8x128xf32> to vector<8x128xf32>
    %20 = arith.addf %17, %19 : vector<8x128xf32>
    %c0_11 = arith.constant 0 : index
    %c0_12 = arith.constant 0 : index
    %c0_13 = arith.constant 0 : index
    %c0_14 = arith.constant 0 : index
    %21 = vector.load %arg4[%c0_11, %c0_12, %c0_13, %c0_14] : memref<1x3x8x128xf32, #tpu.memory_space<vmem>>, vector<1x1x8x128xf32>
    %22 = vector.shape_cast %21 : vector<1x1x8x128xf32> to vector<8x128xf32>
    %23 = vector.shape_cast %20 : vector<8x128xf32> to vector<1x1x8x128xf32>
    tpu.vector_store %arg4[%c0_11, %c0_12, %c0_13, %c0_14], %23 {strides = array<i32>} : memref<1x3x8x128xf32, #tpu.memory_space<vmem>>, vector<1x1x8x128xf32>,
    %c0_15 = arith.constant 0 : index
    %c1 = arith.constant 1 : index
    %c0_16 = arith.constant 0 : index
    %c0_17 = arith.constant 0 : index
    %24 = vector.load %arg4[%c0_15, %c1, %c0_16, %c0_17] : memref<1x3x8x128xf32, #tpu.memory_space<vmem>>, vector<1x1x8x128xf32>
    %25 = vector.shape_cast %24 : vector<1x1x8x128xf32> to vector<8x128xf32>
    %26 = arith.mulf %3, %4 : vector<16x128xf32>
    %27 = vector.shape_cast %26 : vector<16x128xf32> to vector<2x8x128xf32>
    %cst_18 = arith.constant dense<0.000000e+00> : vector<8x128xf32>
    %28 = vector.multi_reduction <add>, %27, %cst_18 [0] : vector<2x8x128xf32> to vector<8x128xf32>
    %29 = arith.addf %25, %28 : vector<8x128xf32>
    %c0_19 = arith.constant 0 : index
    %c1_20 = arith.constant 1 : index
    %c0_21 = arith.constant 0 : index
    %c0_22 = arith.constant 0 : index
    %30 = vector.load %arg4[%c0_19, %c1_20, %c0_21, %c0_22] : memref<1x3x8x128xf32, #tpu.memory_space<vmem>>, vector<1x1x8x128xf32>
    %31 = vector.shape_cast %30 : vector<1x1x8x128xf32> to vector<8x128xf32>
    %32 = vector.shape_cast %29 : vector<8x128xf32> to vector<1x1x8x128xf32>
    tpu.vector_store %arg4[%c0_19, %c1_20, %c0_21, %c0_22], %32 {strides = array<i32>} : memref<1x3x8x128xf32, #tpu.memory_space<vmem>>, vector<1x1x8x128xf32>,
    %c0_23 = arith.constant 0 : index
    %c2 = arith.constant 2 : index
    %c0_24 = arith.constant 0 : index
    %c0_25 = arith.constant 0 : index
    %33 = vector.load %arg4[%c0_23, %c2, %c0_24, %c0_25] : memref<1x3x8x128xf32, #tpu.memory_space<vmem>>, vector<1x1x8x128xf32>
    %34 = vector.shape_cast %33 : vector<1x1x8x128xf32> to vector<8x128xf32>
    %35 = arith.addf %3, %4 : vector<16x128xf32>
    %36 = vector.shape_cast %35 : vector<16x128xf32> to vector<2x8x128xf32>
    %cst_26 = arith.constant dense<0.000000e+00> : vector<8x128xf32>
    %37 = vector.multi_reduction <add>, %36, %cst_26 [0] : vector<2x8x128xf32> to vector<8x128xf32>
    %38 = arith.addf %34, %37 : vector<8x128xf32>
    %c0_27 = arith.constant 0 : index
    %c2_28 = arith.constant 2 : index
    %c0_29 = arith.constant 0 : index
    %c0_30 = arith.constant 0 : index
    %39 = vector.load %arg4[%c0_27, %c2_28, %c0_29, %c0_30] : memref<1x3x8x128xf32, #tpu.memory_space<vmem>>, vector<1x1x8x128xf32>
    %40 = vector.shape_cast %39 : vector<1x1x8x128xf32> to vector<8x128xf32>
    %41 = vector.shape_cast %38 : vector<8x128xf32> to vector<1x1x8x128xf32>
    tpu.vector_store %arg4[%c0_27, %c2_28, %c0_29, %c0_30], %41 {strides = array<i32>} : memref<1x3x8x128xf32, #tpu.memory_space<vmem>>, vector<1x1x8x128xf32>,
    return
  }
  func.func @transform_0(%arg0: i32, %arg1: i32) -> (i32, i32) {
    %c1_i32 = arith.constant 1 : i32
    %0 = arith.muli %arg0, %c1_i32 : i32
    %1 = arith.addi %0, %arg1 : i32
    %c0_i32 = arith.constant 0 : i32
    %c0_i32_0 = arith.constant 0 : i32
    return %1, %c0_i32 : i32, i32
  }
  func.func @transform_1(%arg0: i32, %arg1: i32) -> (i32, i32) {
    %c1_i32 = arith.constant 1 : i32
    %0 = arith.muli %arg0, %c1_i32 : i32
    %1 = arith.addi %0, %arg1 : i32
    %c0_i32 = arith.constant 0 : i32
    %c0_i32_0 = arith.constant 0 : i32
    return %1, %c0_i32 : i32, i32
  }
  func.func @transform_2(%arg0: i32, %arg1: i32) -> (i32, i32, i32, i32) {
    %c0_i32 = arith.constant 0 : i32
    %c0_i32_0 = arith.constant 0 : i32
    %c0_i32_1 = arith.constant 0 : i32
    %c0_i32_2 = arith.constant 0 : i32
    return %arg0, %c0_i32, %c0_i32_0, %c0_i32_1 : i32, i32, i32, i32
  }
}

</mosaic_0001>

<llo_original>
// kernel: bce_dice_loss.1
$region0: #{bce_dice_loss.1}
  #allocation0 [shape = 'u32[]', space=smem, size = 0x4, offset = 0x4, fixed_abs, tag = 'smem constant byte address 0x4 - core index']
  #allocation1 [shape = 'u32[144,128]{1,0:T(1,128)}', space=vmem, size = 0x12000, scoped, tag = 'internal scratch']
  %s0 = inlined_call_operand.vmem [shape: f32[16,128], index: 0, kind: input, shape index: {}]
  %s1 = inlined_call_operand.vmem [shape: f32[16,128], index: 1, kind: input, shape index: {}]
  %s2 = inlined_call_operand.vmem [shape: f32[1,3,8,128], index: 2, kind: output, shape index: {}]
  %s3 = sld [smem:[#allocation0]]
  $region22: #{bce_dice_loss.1} parent=0
    _
  %s5 = ssub.s32 1, %s3
  %s6 = scalar_select 0, %s5, %s3
  // Predicated region
  $region2: #{bce_dice_loss.1} parent=0 // pred_check
    _
  $region3: #{bce_dice_loss.1} parent=0 // pred_check_branch
    %8 = sbr.rel (0) target = $region5
  $region4: #{bce_dice_loss.1} parent=0 // pred_region
    %s9 = sadd.s32 0, 0
    %s10 = smul.u32 2, %s9
    %p11 = scmp.lt.s32.totalorder %s10, 1
    %s12 = scalar_select %p11, %s10, 1
    %s13 = smul.addr %s12, 8
    %s14 = scalar_lea.vmem %s0, %s13
    %s15 = sadd.s32 0, 0
    %s16 = smul.u32 2, %s15
  $region5: #{bce_dice_loss.1} parent=0 // pred_fallthru
    _
  // Predicated region
  $region6: #{bce_dice_loss.1} parent=0 // pred_check
    _
  $region7: #{bce_dice_loss.1} parent=0 // pred_check_branch
    %18 = sbr.rel (0) target = $region9
  $region8: #{bce_dice_loss.1} parent=0 // pred_region
    %s19 = sadd.s32 0, 0
    %s20 = smul.u32 2, %s19
    %p21 = scmp.lt.s32.totalorder %s20, 1
    %s22 = scalar_select %p21, %s20, 1
    %s23 = smul.addr %s22, 8
    %s24 = scalar_lea.vmem %s1, %s23
    %s25 = sadd.s32 0, 0
    %s26 = smul.u32 2, %s25
  $region9: #{bce_dice_loss.1} parent=0 // pred_fallthru
    _
  %s27 = sadd.s32 0, 0
  %s28 = smul.u32 2, %s27
  %p29 = scmp.lt.s32.totalorder %s28, 1
  %s30 = scalar_select %p29, %s28, 1
  %s31 = smul.addr %s30, 8
  %s32 = scalar_lea.vmem %s0, %s31
  %s33 = sadd.s32 0, 0
  %s34 = smul.u32 2, %s33
  %p35 = scmp.lt.s32.totalorder %s34, 1
  %s36 = scalar_select %p35, %s34, 1
  %s37 = smul.addr %s36, 8
  %s38 = scalar_lea.vmem %s1, %s37
  %s39 = sadd.s32 0, 0
  %s40 = smul.u32 2, %s39
  %p41 = scmp.lt.s32.totalorder %s40, 1
  %s42 = scalar_select %p41, %s40, 1
  %s43 = smul.addr %s42, 8
  %s44 = scalar_lea.vmem %s0, %s43
  %s45 = sadd.s32 0, 0
  %s46 = smul.u32 2, %s45
  %s47 = sadd.s32 0, 0
  %s48 = smul.u32 2, %s47
  %p49 = scmp.lt.s32.totalorder %s48, 1
  %s50 = scalar_select %p49, %s48, 1
  %s51 = smul.addr %s50, 8
  %s52 = scalar_lea.vmem %s1, %s51
  %s53 = sadd.s32 0, 0
  %s54 = smul.u32 2, %s53
  %p55 = scmp.eq.s32.totalorder 0, 0
  // Predicated region
  $region10: #{bce_dice_loss.1} parent=0 // pred_check
    %p56 = pneg %p55
  $region11: #{bce_dice_loss.1} parent=0 // pred_check_branch
    %58 = sbr.rel (%p56) target = $region13
  $region12: #{bce_dice_loss.1} parent=0 // pred_region
    %59 = vst [vmem:[%s2] sm:$0xff] 0.0
    %60 = vst [vmem:[%s2 + $0x8] sm:$0xff] 0.0
    %61 = vst [vmem:[%s2 + $0x10] sm:$0xff] 0.0
  $region13: #{bce_dice_loss.1} parent=0 // pred_fallthru
    _
  %v62 = vld [vmem:[%s44] sm:$0xff]
  %v63 = vld [vmem:[%s44 + $0x8] sm:$0xff]
  %v64 = vld [vmem:[%s52] sm:$0xff]
  %v65 = vld [vmem:[%s52 + $0x8] sm:$0xff]
  %v66 = vlog2.pop %v62
  %v67 = vmul.f32 %v66, 0.6931472
  %v68 = vlog2.pop %v63
  %v69 = vmul.f32 %v68, 0.6931472
  %v70 = vmax.f32 %v67, -100.0
  %v71 = vmax.f32 %v69, -100.0
  %v72 = vsub.f32 1.0, %v62
  %v73 = vsub.f32 1.0, %v63
  %v74 = vlog2.pop %v72
  %v75 = vmul.f32 %v74, 0.6931472
  %v76 = vlog2.pop %v73
  %v77 = vmul.f32 %v76, 0.6931472
  %v78 = vmax.f32 %v75, -100.0
  %v79 = vmax.f32 %v77, -100.0
  %v80 = vsub.f32 %v70, %v78
  %v81 = vsub.f32 %v71, %v79
  %v82 = vmul.f32 %v64, %v80
  %v83 = vmul.f32 %v65, %v81
  %v84 = vadd.f32 %v78, %v82
  %v85 = vadd.f32 %v79, %v83
  %v86 = vld [vmem:[%s2] sm:$0xff]
  %v87 = vadd.f32 %v84, %v85
  %v88 = vadd.f32 %v86, %v87
  %89 = vst [vmem:[%s2] sm:$0xff] %v88
  %s90 = scalar_lea.vmem %s2, 8
  %v91 = vld [vmem:[%s90] sm:$0xff]
  %v92 = vmul.f32 %v62, %v64
  %v93 = vmul.f32 %v63, %v65
  %v94 = vadd.f32 %v92, %v93
  %v95 = vadd.f32 %v91, %v94
  %96 = vst [vmem:[%s90] sm:$0xff] %v95
  %s97 = scalar_lea.vmem %s2, 16
  %v98 = vld [vmem:[%s97] sm:$0xff]
  %v99 = vadd.f32 %v62, %v64
  %v100 = vadd.f32 %v63, %v65
  %v101 = vadd.f32 %v99, %v100
  %v102 = vadd.f32 %v98, %v101
  %103 = vst [vmem:[%s97] sm:$0xff] %v102
  // Predicated region
  $region14: #{bce_dice_loss.1} parent=0 // pred_check
    _
  $region15: #{bce_dice_loss.1} parent=0 // pred_check_branch
    %105 = sbr.rel (0) target = $region17
  $region16: #{bce_dice_loss.1} parent=0 // pred_region
    _
  $region17: #{bce_dice_loss.1} parent=0 // pred_fallthru
    _
  // Predicated region
  $region18: #{bce_dice_loss.1} parent=0 // pred_check
    _
  $region19: #{bce_dice_loss.1} parent=0 // pred_check_branch
    %107 = sbr.rel (0) target = $region21
  $region20: #{bce_dice_loss.1} parent=0 // pred_region
    _
  $region21: #{bce_dice_loss.1} parent=0 // pred_fallthru
    _

</llo_original>
